<compile_context>
chip_gen: v5e
topology: v5e:2x2
jax: 0.10.0
libtpu: 0.0.40
codegen_flags: <defaults>
</compile_context>

<pallas_src>
import jax
import jax.numpy as jnp
from jax.experimental import pallas as pl
from jax.experimental.pallas import tpu as pltpu

# Degrees of numerator / denominator, as in the PyTorch module default (5, 4).
DEGREES = (5, 4)
LEN_NUM = DEGREES[0] + 1   # 6 numerator coefficients a0..a5
LEN_DEN = DEGREES[1]       # 4 denominator coefficients b0..b3

# Deterministic initialization approximating leaky_relu (what
# get_parameters("A", (5,4), "leaky_relu") would load from
# rationals_config.json).  Fixed in-script; no checkpoint is read.
W_NUMERATOR = jnp.array(
    [0.02996348, 0.61690165, 2.37539147, 3.06608078, 1.52474449, 0.25281987],
    dtype=jnp.float32,
)
W_DENOMINATOR = jnp.array(
    [1.19160814, 4.40811795, 0.91111034, 0.34885983],
    dtype=jnp.float32,
)

_WIDTHS = (2048, 1024, 512, 256, 128)    # preferred lane-dense last dims
_FALLBACK_WIDTH = 512                    # used when nothing divides n (tail path)
_TARGET_TILE_BYTES = 2 * 1024 * 1024     # ~2 MiB per tile per buffer


def _rational_a_kernel(num_ref, abs_den_ref, x_ref, o_ref):
    """Elementwise Rational-A on one (block_rows, width) VMEM tile.

    num_ref:     SMEM f32[LEN_NUM]  numerator coefficients a0..a5
    abs_den_ref: SMEM f32[LEN_DEN]  |denominator| coefficients |b0|..|b3|
    x_ref / o_ref: VMEM [block_rows, width], source dtype.
    """
    x = x_ref[...].astype(jnp.float32)
    ax = jnp.abs(x)

    # Numerator P(x) via Horner; init folded into the first multiply-add.
    p = x * num_ref[LEN_NUM - 1] + num_ref[LEN_NUM - 2]
    for i in range(LEN_NUM - 3, -1, -1):
        p = p * x + num_ref[i]

    # Denominator Q(x) = 1 + |b0||x| + |b1||x|^2 + |b2||x|^3 + |b3||x|^4
    # via Horner on |x| with precomputed |b_j| (|b_j * x^k| == |b_j| * |x|^k).
    q = ax * abs_den_ref[LEN_DEN - 1] + abs_den_ref[LEN_DEN - 2]
    for j in range(LEN_DEN - 3, -1, -1):
        q = q * ax + abs_den_ref[j]
    q = q * ax + 1.0

    # Exact divide (Q >= 1 everywhere); stays within 1e-5 of the reference.
    o_ref[...] = (p / q).astype(o_ref.dtype)


def _rational_a_jnp(z, num, abs_den):
    """Plain-JAX Horner evaluation for the tiny (<width) ragged tail."""
    zf = z.astype(jnp.float32)
    az = jnp.abs(zf)
    p = zf * num[LEN_NUM - 1] + num[LEN_NUM - 2]
    for i in range(LEN_NUM - 3, -1, -1):
        p = p * zf + num[i]
    q = az * abs_den[LEN_DEN - 1] + abs_den[LEN_DEN - 2]
    for j in range(LEN_DEN - 3, -1, -1):
        q = q * az + abs_den[j]
    q = q * az + 1.0
    return p / q


def _choose_width(n):
    """Pick the widest lane-dense width that divides n (prefer >= 8 rows)."""
    for w in _WIDTHS:
        if n % w == 0 and n // w >= 8:
            return w
    for w in _WIDTHS:
        if n % w == 0:
            return w
    return _FALLBACK_WIDTH   # ragged: prefix goes to the kernel, tail to JAX


@jax.jit
def rational_forward(x, numerator, denominator):
    """Applies the Rational (version A) activation elementwise to x (any shape)."""
    orig_shape = x.shape
    orig_dtype = x.dtype
    n = x.size
    flat = x.reshape(-1)

    num_f32 = numerator.astype(jnp.float32)
    # Hoist the scalar abs out of the kernel (4 elements, negligible).
    abs_den_f32 = jnp.abs(denominator).astype(jnp.float32)

    width = _choose_width(n)
    rows = n // width
    prefix = rows * width

    pieces = []
    if rows > 0:
        # Reshape of a contiguous prefix: no extra HBM pass.
        x2d = flat[:prefix].reshape(rows, width)

        itemsize = jnp.dtype(orig_dtype).itemsize
        row_align = 8 * max(1, 4 // itemsize)            # 8 f32, 16 bf16, 32 int8
        target_rows = (_TARGET_TILE_BYTES // (width * itemsize)) // row_align * row_align
        target_rows = max(row_align, target_rows)
        block_rows = rows if rows <= target_rows else target_rows
        grid = (pl.cdiv(rows, block_rows),)              # ragged last block masked by Pallas

        out2d = pl.pallas_call(
            _rational_a_kernel,
            out_shape=jax.ShapeDtypeStruct((rows, width), orig_dtype),
            grid_spec=pltpu.PrefetchScalarGridSpec(
                num_scalar_prefetch=0,
                grid=grid,
                in_specs=[
                    pl.BlockSpec(memory_space=pltpu.MemorySpace.SMEM),    # numerator
                    pl.BlockSpec(memory_space=pltpu.MemorySpace.SMEM),    # |denominator|
                    pl.BlockSpec((block_rows, width), lambda i: (i, 0)),  # x tile
                ],
                out_specs=pl.BlockSpec((block_rows, width), lambda i: (i, 0)),
            ),
            compiler_params=pltpu.CompilerParams(
                dimension_semantics=("parallel",),
                vmem_limit_bytes=32 * 1024 * 1024,
            ),
        )(num_f32, abs_den_f32, x2d)
        pieces.append(out2d.reshape(-1))

    if prefix < n:
        # Tiny tail (< width elements): plain JAX, no padded copies of x / out.
        tail = _rational_a_jnp(flat[prefix:], num_f32, abs_den_f32).astype(orig_dtype)
        pieces.append(tail)

    out = pieces[0] if len(pieces) == 1 else jnp.concatenate(pieces)
    return out.reshape(orig_shape)


def _rational_a_reference(x, numerator, denominator):
    """Pure-JAX reference mirroring Rational_PYTORCH_A_F."""
    z = x.reshape(-1).astype(jnp.float32)
    powers = jnp.stack([z**i for i in range(LEN_NUM)], axis=1)   # (N, 6)
    num = (powers * numerator[None, :]).sum(axis=1)
    expanded_dw = jnp.concatenate(
        [jnp.array([1.0], jnp.float32), denominator,
         jnp.zeros((LEN_NUM - LEN_DEN - 1,), jnp.float32)]
    )
    den = jnp.abs(powers * expanded_dw[None, :]).sum(axis=1)
    return (num / den).reshape(x.shape).astype(x.dtype)


if __name__ == "__main__":
    key = jax.random.PRNGKey(0)
    k1, k2, k3, k4 = jax.random.split(key, 4)

    # Primary NCHW conv-activation shape (module spec scale).
    x1 = jax.random.normal(k1, (2, 4, 16, 16), dtype=jnp.float32)
    # Element count not a multiple of 128 -> pure plain-JAX tail path.
    x2 = jax.random.normal(k2, (2, 3, 5, 7), dtype=jnp.float32)
    # Bigger slab -> multi-step grid with a ragged last row-block.
    x3 = jax.random.normal(k3, (16, 16, 56, 56), dtype=jnp.float32)
    # Odd element count above one width -> kernel prefix + JAX tail.
    x4 = jax.random.normal(k4, (3, 7, 11, 13), dtype=jnp.float32)

    for x in (x1, x2, x3, x4):
        out = jax.block_until_ready(rational_forward(x, W_NUMERATOR, W_DENOMINATOR))
        ref = _rational_a_reference(x, W_NUMERATOR, W_DENOMINATOR)
        assert out.shape == x.shape and out.dtype == x.dtype
        assert jnp.allclose(out, ref, rtol=1e-5, atol=1e-5), "mismatch vs reference"

    print("KERNEL_OK")
</pallas_src>

<mosaic_0001>
module attributes {stable_mosaic.version = 11 : i64} {
  func.func @_rational_a_kernel(%arg0: i32, %arg1: memref<6xf32, #tpu.memory_space<smem>>, %arg2: memref<4xf32, #tpu.memory_space<smem>>, %arg3: memref<8x256xf32, #tpu.memory_space<vmem>>, %arg4: memref<8x256xf32, #tpu.memory_space<vmem>>) attributes {dimension_semantics = [#tpu.dimension_semantics<parallel>], iteration_bounds = array<i64: 1>, scalar_prefetch = 0 : i64, scratch_operands = 0 : i64, tpu.core_type = #tpu.core_type<tc>, window_params = [{transform_indices = @transform_0, window_bounds = array<i64: 6>}, {transform_indices = @transform_1, window_bounds = array<i64: 4>}, {transform_indices = @transform_2, window_bounds = array<i64: 8, 256>}, {transform_indices = @transform_3, window_bounds = array<i64: 8, 256>}]} {
    %c0 = arith.constant 0 : index
    %c0_0 = arith.constant 0 : index
    %0 = vector.load %arg3[%c0, %c0_0] : memref<8x256xf32, #tpu.memory_space<vmem>>, vector<8x256xf32>
    %1 = math.absf %0 : vector<8x256xf32>
    %c5 = arith.constant 5 : index
    %2 = memref.load %arg1[%c5] : memref<6xf32, #tpu.memory_space<smem>>
    %3 = vector.broadcast %2 : f32 to vector<8x256xf32>
    %4 = arith.mulf %0, %3 : vector<8x256xf32>
    %c4 = arith.constant 4 : index
    %5 = memref.load %arg1[%c4] : memref<6xf32, #tpu.memory_space<smem>>
    %6 = vector.broadcast %5 : f32 to vector<8x256xf32>
    %7 = arith.addf %4, %6 : vector<8x256xf32>
    %8 = arith.mulf %7, %0 : vector<8x256xf32>
    %c3 = arith.constant 3 : index
    %9 = memref.load %arg1[%c3] : memref<6xf32, #tpu.memory_space<smem>>
    %10 = vector.broadcast %9 : f32 to vector<8x256xf32>
    %11 = arith.addf %8, %10 : vector<8x256xf32>
    %12 = arith.mulf %11, %0 : vector<8x256xf32>
    %c2 = arith.constant 2 : index
    %13 = memref.load %arg1[%c2] : memref<6xf32, #tpu.memory_space<smem>>
    %14 = vector.broadcast %13 : f32 to vector<8x256xf32>
    %15 = arith.addf %12, %14 : vector<8x256xf32>
    %16 = arith.mulf %15, %0 : vector<8x256xf32>
    %c1 = arith.constant 1 : index
    %17 = memref.load %arg1[%c1] : memref<6xf32, #tpu.memory_space<smem>>
    %18 = vector.broadcast %17 : f32 to vector<8x256xf32>
    %19 = arith.addf %16, %18 : vector<8x256xf32>
    %20 = arith.mulf %19, %0 : vector<8x256xf32>
    %c0_1 = arith.constant 0 : index
    %21 = memref.load %arg1[%c0_1] : memref<6xf32, #tpu.memory_space<smem>>
    %22 = vector.broadcast %21 : f32 to vector<8x256xf32>
    %23 = arith.addf %20, %22 : vector<8x256xf32>
    %c3_2 = arith.constant 3 : index
    %24 = memref.load %arg2[%c3_2] : memref<4xf32, #tpu.memory_space<smem>>
    %25 = vector.broadcast %24 : f32 to vector<8x256xf32>
    %26 = arith.mulf %1, %25 : vector<8x256xf32>
    %c2_3 = arith.constant 2 : index
    %27 = memref.load %arg2[%c2_3] : memref<4xf32, #tpu.memory_space<smem>>
    %28 = vector.broadcast %27 : f32 to vector<8x256xf32>
    %29 = arith.addf %26, %28 : vector<8x256xf32>
    %30 = arith.mulf %29, %1 : vector<8x256xf32>
    %c1_4 = arith.constant 1 : index
    %31 = memref.load %arg2[%c1_4] : memref<4xf32, #tpu.memory_space<smem>>
    %32 = vector.broadcast %31 : f32 to vector<8x256xf32>
    %33 = arith.addf %30, %32 : vector<8x256xf32>
    %34 = arith.mulf %33, %1 : vector<8x256xf32>
    %c0_5 = arith.constant 0 : index
    %35 = memref.load %arg2[%c0_5] : memref<4xf32, #tpu.memory_space<smem>>
    %36 = vector.broadcast %35 : f32 to vector<8x256xf32>
    %37 = arith.addf %34, %36 : vector<8x256xf32>
    %38 = arith.mulf %37, %1 : vector<8x256xf32>
    %cst = arith.constant 1.000000e+00 : f32
    %39 = vector.broadcast %cst : f32 to vector<8x256xf32>
    %40 = arith.addf %38, %39 : vector<8x256xf32>
    %41 = arith.divf %23, %40 : vector<8x256xf32>
    %c0_6 = arith.constant 0 : index
    %c0_7 = arith.constant 0 : index
    %42 = vector.load %arg4[%c0_6, %c0_7] : memref<8x256xf32, #tpu.memory_space<vmem>>, vector<8x256xf32>
    tpu.vector_store %arg4[%c0_6, %c0_7], %41 {strides = array<i32>} : memref<8x256xf32, #tpu.memory_space<vmem>>, vector<8x256xf32>,
    return
  }
  func.func @transform_0(%arg0: i32) -> i32 {
    %c0_i32 = arith.constant 0 : i32
    %c0_i32_0 = arith.constant 0 : i32
    return %c0_i32 : i32
  }
  func.func @transform_1(%arg0: i32) -> i32 {
    %c0_i32 = arith.constant 0 : i32
    %c0_i32_0 = arith.constant 0 : i32
    return %c0_i32 : i32
  }
  func.func @transform_2(%arg0: i32) -> (i32, i32) {
    %c0_i32 = arith.constant 0 : i32
    %c0_i32_0 = arith.constant 0 : i32
    return %arg0, %c0_i32 : i32, i32
  }
  func.func @transform_3(%arg0: i32) -> (i32, i32) {
    %c0_i32 = arith.constant 0 : i32
    %c0_i32_0 = arith.constant 0 : i32
    return %arg0, %c0_i32 : i32, i32
  }
}

</mosaic_0001>

<llo_original>
// kernel: rational_forward.1
$region0: #{rational_forward.1}
  #allocation0 [shape = 'u32[]', space=smem, size = 0x4, offset = 0x4, fixed_abs, tag = 'smem constant byte address 0x4 - core index']
  #allocation1 [shape = 'u32[72,128]{1,0:T(1,128)}', space=vmem, size = 0x9000, scoped, tag = 'internal scratch']
  %s0 = inlined_call_operand.vmem [shape: f32[6], index: 0, kind: input, shape index: {}]
  %s1 = inlined_call_operand.vmem [shape: f32[4], index: 1, kind: input, shape index: {}]
  %s2 = inlined_call_operand.vmem [shape: f32[8,256], index: 2, kind: input, shape index: {}]
  %s3 = inlined_call_operand.vmem [shape: f32[8,256], index: 3, kind: output, shape index: {}]
  %s4 = sld [smem:[#allocation0]]
  $region30: #{rational_forward.1} parent=0
    _
  %s6 = ssub.s32 1, %s4
  %s7 = scalar_select 0, %s6, %s4
  $region1: #{rational_forward.1} parent=0
    #allocation2 [shape = 'u8[512]{0}', space=smem, size = 0x200, scoped, tag = 'input window, operand 0, single buffered']
    #allocation3 [shape = 's32[1]{0}', space=sflag, size = 0x4, scoped, tag = 'scoped memory for rational_forward.1']
    #allocation4 [shape = 'u8[512]{0}', space=smem, size = 0x200, scoped, tag = 'input window, operand 1, single buffered']
    #allocation5 [shape = 's32[1]{0}', space=sflag, size = 0x4, scoped, tag = 'scoped memory for rational_forward.1']
    %8 = vsyncpa [#allocation3], 0
    %9 = vsyncpa [#allocation5], 0
    // Predicated region
    $region2: #{rational_forward.1} parent=1 // pred_check
      _
    $region3: #{rational_forward.1} parent=1 // pred_check_branch
      %11 = sbr.rel (0) target = $region5
    $region4: #{rational_forward.1} parent=1 // pred_region
      %13 = vsyncadd [#allocation3], 0
      %s15 = sshll.u32 %s0, 4
      %s16 = int_to_ptr.vmem [resolvable:$true] %s15
      %18 = dma.vmem_to_smem %s16, 16, [#allocation2], [#allocation3]
    $region5: #{rational_forward.1} parent=1 // pred_fallthru
      _
    // Predicated region
    $region6: #{rational_forward.1} parent=1 // pred_check
      _
    $region7: #{rational_forward.1} parent=1 // pred_check_branch
      %20 = sbr.rel (0) target = $region9
    $region8: #{rational_forward.1} parent=1 // pred_region
      %22 = vsyncadd [#allocation5], 0
      %s24 = sshll.u32 %s1, 4
      %s25 = int_to_ptr.vmem [resolvable:$true] %s24
      %27 = dma.vmem_to_smem %s25, 16, [#allocation4], [#allocation5]
    $region9: #{rational_forward.1} parent=1 // pred_fallthru
      _
    // Predicated region
    $region10: #{rational_forward.1} parent=1 // pred_check
      _
    $region11: #{rational_forward.1} parent=1 // pred_check_branch
      %29 = sbr.rel (0) target = $region13
    $region12: #{rational_forward.1} parent=1 // pred_region
      _
    $region13: #{rational_forward.1} parent=1 // pred_fallthru
      _
    // Predicated region
    $region14: #{rational_forward.1} parent=1 // pred_check
      _
    $region15: #{rational_forward.1} parent=1 // pred_check_branch
      %31 = sbr.rel (0) target = $region17
    $region16: #{rational_forward.1} parent=1 // pred_region
      %33 = dma.done [#allocation3], 16
    $region17: #{rational_forward.1} parent=1 // pred_fallthru
      _
    // Predicated region
    $region18: #{rational_forward.1} parent=1 // pred_check
      _
    $region19: #{rational_forward.1} parent=1 // pred_check_branch
      %35 = sbr.rel (0) target = $region21
    $region20: #{rational_forward.1} parent=1 // pred_region
      %37 = dma.done [#allocation5], 16
    $region21: #{rational_forward.1} parent=1 // pred_fallthru
      _
    %38 = sfence
    %v39 = vld [vmem:[%s2] sm:$0xff]
    %v40 = vld [vmem:[%s2 + $0x8] sm:$0xff]
    %v41 = vand.u32 2147483647, %v39
    %v42 = vand.u32 2147483647, %v40
    %s43 = sld [smem:[#allocation2 + $0x5]]
    %v44 = vstv %s43
    %v45 = vmul.f32 %v39, %v44
    %v46 = vmul.f32 %v40, %v44
    %s47 = sld [smem:[#allocation2 + $0x4]]
    %v48 = vstv %s47
    %v49 = vadd.f32 %v45, %v48
    %v50 = vadd.f32 %v46, %v48
    %v51 = vmul.f32 %v49, %v39
    %v52 = vmul.f32 %v50, %v40
    %s53 = sld [smem:[#allocation2 + $0x3]]
    %v54 = vstv %s53
    %v55 = vadd.f32 %v51, %v54
    %v56 = vadd.f32 %v52, %v54
    %v57 = vmul.f32 %v55, %v39
    %v58 = vmul.f32 %v56, %v40
    %s59 = sld [smem:[#allocation2 + $0x2]]
    %v60 = vstv %s59
    %v61 = vadd.f32 %v57, %v60
    %v62 = vadd.f32 %v58, %v60
    %v63 = vmul.f32 %v61, %v39
    %v64 = vmul.f32 %v62, %v40
    %s65 = sld [smem:[#allocation2 + $0x1]]
    %v66 = vstv %s65
    %v67 = vadd.f32 %v63, %v66
    %v68 = vadd.f32 %v64, %v66
    %v69 = vmul.f32 %v67, %v39
    %v70 = vmul.f32 %v68, %v40
    %s71 = sld [smem:[#allocation2]]
    %v72 = vstv %s71
    %v73 = vadd.f32 %v69, %v72
    %v74 = vadd.f32 %v70, %v72
    %s75 = sld [smem:[#allocation4 + $0x3]]
    %v76 = vstv %s75
    %v77 = vmul.f32 %v41, %v76
    %v78 = vmul.f32 %v42, %v76
    %s79 = sld [smem:[#allocation4 + $0x2]]
    %v80 = vstv %s79
    %v81 = vadd.f32 %v77, %v80
    %v82 = vadd.f32 %v78, %v80
    %v83 = vmul.f32 %v81, %v41
    %v84 = vmul.f32 %v82, %v42
    %s85 = sld [smem:[#allocation4 + $0x1]]
    %v86 = vstv %s85
    %v87 = vadd.f32 %v83, %v86
    %v88 = vadd.f32 %v84, %v86
    %v89 = vmul.f32 %v87, %v41
    %v90 = vmul.f32 %v88, %v42
    %s91 = sld [smem:[#allocation4]]
    %v92 = vstv %s91
    %v93 = vadd.f32 %v89, %v92
    %v94 = vadd.f32 %v90, %v92
    %v95 = vmul.f32 %v93, %v41
    %v96 = vmul.f32 %v94, %v42
    %v97 = vadd.f32 %v95, 1.0
    %v98 = vadd.f32 %v96, 1.0
    %v99 = vrcp.pop %v97
    %v100 = vmul.f32 %v97, %v99
    %v101 = vsub.f32 1.0, %v100
    %v102 = vmul.f32 %v99, %v101
    %v103 = vadd.f32 %v99, %v102
    %vm104 = vweird.f32 %v97
    %vm105 = vweird.f32 %v99
    %vm106 = vmor %vm104, %vm105
    %v107 = vsel %vm106, %v99, %v103
    %v108 = vand.u32 2147483647, %v97
    %vm109 = vcmp.eq.f32.partialorder %v108, 8.507059e+37
    %v110 = vand.u32 %v97, 2147483648
    %v111 = vor.u32 1.1754944e-38, %v110
    %v112 = vsel %vm109, %v111, %v107
    %v113 = vmul.f32 %v73, %v112
    %v114 = vrcp.pop %v98
    %v115 = vmul.f32 %v98, %v114
    %v116 = vsub.f32 1.0, %v115
    %v117 = vmul.f32 %v114, %v116
    %v118 = vadd.f32 %v114, %v117
    %vm119 = vweird.f32 %v98
    %vm120 = vweird.f32 %v114
    %vm121 = vmor %vm119, %vm120
    %v122 = vsel %vm121, %v114, %v118
    %v123 = vand.u32 2147483647, %v98
    %vm124 = vcmp.eq.f32.partialorder %v123, 8.507059e+37
    %v125 = vand.u32 %v98, 2147483648
    %v126 = vor.u32 1.1754944e-38, %v125
    %v127 = vsel %vm124, %v126, %v122
    %v128 = vmul.f32 %v74, %v127
    %129 = vst [vmem:[%s3] sm:$0xff] %v113
    %130 = vst [vmem:[%s3 + $0x8] sm:$0xff] %v128
    // Predicated region
    $region22: #{rational_forward.1} parent=1 // pred_check
      _
    $region23: #{rational_forward.1} parent=1 // pred_check_branch
      %132 = sbr.rel (0) target = $region25
    $region24: #{rational_forward.1} parent=1 // pred_region
      _
    $region25: #{rational_forward.1} parent=1 // pred_fallthru
      _
    // Predicated region
    $region26: #{rational_forward.1} parent=1 // pred_check
      _
    $region27: #{rational_forward.1} parent=1 // pred_check_branch
      %134 = sbr.rel (0) target = $region29
    $region28: #{rational_forward.1} parent=1 // pred_region
      _
    $region29: #{rational_forward.1} parent=1 // pred_fallthru
      _
    %135 = vsyncpa [#allocation3], 1
    %136 = vsyncpa [#allocation5], 1

</llo_original>
